<compile_context>
chip_gen: v5e
topology: v5e:2x2
jax: 0.10.0
libtpu: 0.0.40
codegen_flags: <defaults>
</compile_context>

<pallas_src>
import jax
import jax.numpy as jnp
from jax.experimental import pallas as pl
from jax.experimental.pallas import tpu as pltpu


def channel_mix_kernel(w2_ref, x_ref, o_ref):
    # w2_ref: (C, C) float32 in SMEM (folded weight W @ W), read as scalars.
    # x_ref / o_ref: (Nb, C, R, 128) float32 VMEM blocks — spatial is dense in
    # the trailing (sublane, lane) = (R, 128) dims, so loads/stores are
    # full-width and unmasked.
    C = x_ref.shape[1]
    # Load each channel slab once: (Nb, 1, R, 128).
    xs = [x_ref[:, c:c + 1, :, :] for c in range(C)]
    # C x C broadcast scalar*vector FMAs on the VPU.
    # Scalability guard: for C >= ~32-64 this unrolled VPU mix should switch to
    # an MXU jnp.dot over a (C, R*128) slab (preferred_element_type=f32);
    # at C=3 the VPU path is the right call.
    for o in range(C):
        acc = w2_ref[o, 0] * xs[0]
        for c in range(1, C):
            acc = acc + w2_ref[o, c] * xs[c]
        o_ref[:, o:o + 1, :, :] = acc


def reuse_model_forward(x_nchw, weight, *, tile_rows=512, target_block_bytes=1 << 20):
    """x_nchw: (N, C, H, W) float32; weight: (Cout, Cin) from Conv2d(C, C, 1, bias=False)."""
    N, C, H, W = x_nchw.shape
    HW = H * W
    lane = 128

    # Fold the reused conv: conv(conv(x)) == channel mix by W2 = W @ W (done once, outside grid).
    w2 = jnp.dot(weight, weight)

    # Channels-first, no transposes: (N, C, H, W) -> (N, C, HW) is a free reshape.
    x_flat = x_nchw.reshape(N, C, HW)

    # Pad spatial only if needed to make it a multiple of 128, then fold it into
    # dense (rows, 128) = (sublane, lane) slabs.
    HW_pad = ((HW + lane - 1) // lane) * lane
    if HW_pad != HW:
        x_flat = jnp.pad(x_flat, ((0, 0), (0, 0), (0, HW_pad - HW)))
    rows = HW_pad // lane
    x4 = x_flat.reshape(N, C, rows, lane)

    # Rows per tile: a multiple of 8, or the full extent when the image is small
    # (full-extent trailing dims are exempt from the (8, 128) divisibility rule).
    tile_rows = max(8, (tile_rows // 8) * 8)
    R = rows if rows <= tile_rows else tile_rows

    # Batch sub-block: for tiny images, process several batches per grid step so
    # per-step work is not dominated by fixed overhead. Keep >= 2 batch steps
    # (megacore) and only exact divisors of N (no ragged batch blocks).
    per_batch_tile_bytes = C * R * lane * 4
    nb = 1
    if N >= 4 and per_batch_tile_bytes < target_block_bytes:
        nb = min(N // 2, max(1, target_block_bytes // per_batch_tile_bytes))
        while N % nb:
            nb -= 1

    grid = (N // nb, pl.cdiv(rows, R))

    cost = pl.CostEstimate(
        flops=2 * C * C * N * HW,
        transcendentals=0,
        bytes_accessed=2 * N * C * HW * 4 + C * C * 4,
    )

    out4 = pl.pallas_call(
        channel_mix_kernel,
        out_shape=jax.ShapeDtypeStruct((N, C, rows, lane), x4.dtype),
        grid_spec=pltpu.PrefetchScalarGridSpec(
            num_scalar_prefetch=0,
            grid=grid,
            in_specs=[
                # Tiny folded weight lives in SMEM, read as scalars.
                pl.BlockSpec(memory_space=pltpu.MemorySpace.SMEM),
                # (batch sub-block, full channels, sublane-dense rows, lane-dense 128)
                pl.BlockSpec((nb, C, R, lane), lambda n, s: (n, 0, s, 0)),
            ],
            out_specs=pl.BlockSpec((nb, C, R, lane), lambda n, s: (n, 0, s, 0)),
        ),
        compiler_params=pltpu.CompilerParams(
            dimension_semantics=("parallel", "parallel")),
        cost_estimate=cost,
    )(w2, x4)

    # Restore NCHW; slice off spatial padding only if any was added.
    out_flat = out4.reshape(N, C, HW_pad)
    if HW_pad != HW:
        out_flat = out_flat[:, :, :HW]
    return out_flat.reshape(N, C, H, W)


if __name__ == "__main__":
    key = jax.random.PRNGKey(0)
    k_x, k_w = jax.random.split(key)

    # ReuseModel defaults: num_channels=3, kernel_size=1.
    N, C, H, W = 2, 3, 16, 16
    x = jax.random.normal(k_x, (N, C, H, W), dtype=jnp.float32)

    # Conv2d(3, 3, 1, bias=False) weight is (Cout, Cin, 1, 1); use the squeezed (Cout, Cin).
    # Deterministic init mimicking torch's kaiming-uniform bound 1/sqrt(fan_in).
    fan_in = C * 1 * 1
    bound = 1.0 / jnp.sqrt(fan_in)
    w = jax.random.uniform(k_w, (C, C), dtype=jnp.float32, minval=-bound, maxval=bound)

    y = reuse_model_forward(x, w)
    jax.block_until_ready(y)

    # Pure-JAX reference: two chained 1x1 convs (channel matmuls) with the same weight.
    inner = jnp.einsum("oc,nchw->nohw", w, x)
    ref = jnp.einsum("oc,nchw->nohw", w, inner)
    assert y.shape == (N, C, H, W)
    assert jnp.allclose(y, ref, atol=1e-5, rtol=1e-5), "mismatch vs reference"

    print("KERNEL_OK")
</pallas_src>

<mosaic_0001>
module attributes {stable_mosaic.version = 11 : i64} {
  func.func @channel_mix_kernel(%arg0: i32, %arg1: i32, %arg2: memref<3x3xf32, #tpu.memory_space<smem>>, %arg3: memref<1x3x2x128xf32, #tpu.memory_space<vmem>>, %arg4: memref<1x3x2x128xf32, #tpu.memory_space<vmem>>) attributes {dimension_semantics = [#tpu.dimension_semantics<parallel>, #tpu.dimension_semantics<parallel>], iteration_bounds = array<i64: 2, 1>, scalar_prefetch = 0 : i64, scratch_operands = 0 : i64, tpu.core_type = #tpu.core_type<tc>, window_params = [{transform_indices = @transform_0, window_bounds = array<i64: 3, 3>}, {transform_indices = @transform_1, window_bounds = array<i64: 1, 3, 2, 128>}, {transform_indices = @transform_2, window_bounds = array<i64: 1, 3, 2, 128>}]} {
    %c0 = arith.constant 0 : index
    %c0_0 = arith.constant 0 : index
    %c0_1 = arith.constant 0 : index
    %c0_2 = arith.constant 0 : index
    %0 = vector.load %arg3[%c0, %c0_0, %c0_1, %c0_2] : memref<1x3x2x128xf32, #tpu.memory_space<vmem>>, vector<1x1x2x128xf32>
    %c0_3 = arith.constant 0 : index
    %c1 = arith.constant 1 : index
    %c0_4 = arith.constant 0 : index
    %c0_5 = arith.constant 0 : index
    %1 = vector.load %arg3[%c0_3, %c1, %c0_4, %c0_5] : memref<1x3x2x128xf32, #tpu.memory_space<vmem>>, vector<1x1x2x128xf32>
    %c0_6 = arith.constant 0 : index
    %c2 = arith.constant 2 : index
    %c0_7 = arith.constant 0 : index
    %c0_8 = arith.constant 0 : index
    %2 = vector.load %arg3[%c0_6, %c2, %c0_7, %c0_8] : memref<1x3x2x128xf32, #tpu.memory_space<vmem>>, vector<1x1x2x128xf32>
    %c0_9 = arith.constant 0 : index
    %c0_10 = arith.constant 0 : index
    %3 = memref.load %arg2[%c0_9, %c0_10] : memref<3x3xf32, #tpu.memory_space<smem>>
    %4 = vector.broadcast %3 : f32 to vector<1x1x2x128xf32>
    %5 = arith.mulf %4, %0 : vector<1x1x2x128xf32>
    %c0_11 = arith.constant 0 : index
    %c1_12 = arith.constant 1 : index
    %6 = memref.load %arg2[%c0_11, %c1_12] : memref<3x3xf32, #tpu.memory_space<smem>>
    %7 = vector.broadcast %6 : f32 to vector<1x1x2x128xf32>
    %8 = arith.mulf %7, %1 : vector<1x1x2x128xf32>
    %9 = arith.addf %5, %8 : vector<1x1x2x128xf32>
    %c0_13 = arith.constant 0 : index
    %c2_14 = arith.constant 2 : index
    %10 = memref.load %arg2[%c0_13, %c2_14] : memref<3x3xf32, #tpu.memory_space<smem>>
    %11 = vector.broadcast %10 : f32 to vector<1x1x2x128xf32>
    %12 = arith.mulf %11, %2 : vector<1x1x2x128xf32>
    %13 = arith.addf %9, %12 : vector<1x1x2x128xf32>
    %c0_15 = arith.constant 0 : index
    %c0_16 = arith.constant 0 : index
    %c0_17 = arith.constant 0 : index
    %c0_18 = arith.constant 0 : index
    %14 = vector.load %arg4[%c0_15, %c0_16, %c0_17, %c0_18] : memref<1x3x2x128xf32, #tpu.memory_space<vmem>>, vector<1x1x2x128xf32>
    tpu.vector_store %arg4[%c0_15, %c0_16, %c0_17, %c0_18], %13 {strides = array<i32>} : memref<1x3x2x128xf32, #tpu.memory_space<vmem>>, vector<1x1x2x128xf32>,
    %c1_19 = arith.constant 1 : index
    %c0_20 = arith.constant 0 : index
    %15 = memref.load %arg2[%c1_19, %c0_20] : memref<3x3xf32, #tpu.memory_space<smem>>
    %16 = vector.broadcast %15 : f32 to vector<1x1x2x128xf32>
    %17 = arith.mulf %16, %0 : vector<1x1x2x128xf32>
    %c1_21 = arith.constant 1 : index
    %c1_22 = arith.constant 1 : index
    %18 = memref.load %arg2[%c1_21, %c1_22] : memref<3x3xf32, #tpu.memory_space<smem>>
    %19 = vector.broadcast %18 : f32 to vector<1x1x2x128xf32>
    %20 = arith.mulf %19, %1 : vector<1x1x2x128xf32>
    %21 = arith.addf %17, %20 : vector<1x1x2x128xf32>
    %c1_23 = arith.constant 1 : index
    %c2_24 = arith.constant 2 : index
    %22 = memref.load %arg2[%c1_23, %c2_24] : memref<3x3xf32, #tpu.memory_space<smem>>
    %23 = vector.broadcast %22 : f32 to vector<1x1x2x128xf32>
    %24 = arith.mulf %23, %2 : vector<1x1x2x128xf32>
    %25 = arith.addf %21, %24 : vector<1x1x2x128xf32>
    %c0_25 = arith.constant 0 : index
    %c1_26 = arith.constant 1 : index
    %c0_27 = arith.constant 0 : index
    %c0_28 = arith.constant 0 : index
    %26 = vector.load %arg4[%c0_25, %c1_26, %c0_27, %c0_28] : memref<1x3x2x128xf32, #tpu.memory_space<vmem>>, vector<1x1x2x128xf32>
    tpu.vector_store %arg4[%c0_25, %c1_26, %c0_27, %c0_28], %25 {strides = array<i32>} : memref<1x3x2x128xf32, #tpu.memory_space<vmem>>, vector<1x1x2x128xf32>,
    %c2_29 = arith.constant 2 : index
    %c0_30 = arith.constant 0 : index
    %27 = memref.load %arg2[%c2_29, %c0_30] : memref<3x3xf32, #tpu.memory_space<smem>>
    %28 = vector.broadcast %27 : f32 to vector<1x1x2x128xf32>
    %29 = arith.mulf %28, %0 : vector<1x1x2x128xf32>
    %c2_31 = arith.constant 2 : index
    %c1_32 = arith.constant 1 : index
    %30 = memref.load %arg2[%c2_31, %c1_32] : memref<3x3xf32, #tpu.memory_space<smem>>
    %31 = vector.broadcast %30 : f32 to vector<1x1x2x128xf32>
    %32 = arith.mulf %31, %1 : vector<1x1x2x128xf32>
    %33 = arith.addf %29, %32 : vector<1x1x2x128xf32>
    %c2_33 = arith.constant 2 : index
    %c2_34 = arith.constant 2 : index
    %34 = memref.load %arg2[%c2_33, %c2_34] : memref<3x3xf32, #tpu.memory_space<smem>>
    %35 = vector.broadcast %34 : f32 to vector<1x1x2x128xf32>
    %36 = arith.mulf %35, %2 : vector<1x1x2x128xf32>
    %37 = arith.addf %33, %36 : vector<1x1x2x128xf32>
    %c0_35 = arith.constant 0 : index
    %c2_36 = arith.constant 2 : index
    %c0_37 = arith.constant 0 : index
    %c0_38 = arith.constant 0 : index
    %38 = vector.load %arg4[%c0_35, %c2_36, %c0_37, %c0_38] : memref<1x3x2x128xf32, #tpu.memory_space<vmem>>, vector<1x1x2x128xf32>
    tpu.vector_store %arg4[%c0_35, %c2_36, %c0_37, %c0_38], %37 {strides = array<i32>} : memref<1x3x2x128xf32, #tpu.memory_space<vmem>>, vector<1x1x2x128xf32>,
    return
  }
  func.func @transform_0(%arg0: i32, %arg1: i32) -> (i32, i32) {
    %c0_i32 = arith.constant 0 : i32
    %c0_i32_0 = arith.constant 0 : i32
    %c0_i32_1 = arith.constant 0 : i32
    return %c0_i32, %c0_i32_0 : i32, i32
  }
  func.func @transform_1(%arg0: i32, %arg1: i32) -> (i32, i32, i32, i32) {
    %c0_i32 = arith.constant 0 : i32
    %c0_i32_0 = arith.constant 0 : i32
    %c0_i32_1 = arith.constant 0 : i32
    return %arg0, %c0_i32, %arg1, %c0_i32_0 : i32, i32, i32, i32
  }
  func.func @transform_2(%arg0: i32, %arg1: i32) -> (i32, i32, i32, i32) {
    %c0_i32 = arith.constant 0 : i32
    %c0_i32_0 = arith.constant 0 : i32
    %c0_i32_1 = arith.constant 0 : i32
    return %arg0, %c0_i32, %arg1, %c0_i32_0 : i32, i32, i32, i32
  }
}

</mosaic_0001>

<llo_original>
// kernel: tpu_custom_call.1
$region0: #{tpu_custom_call.1}
  #allocation0 [shape = 'u32[]', space=smem, size = 0x4, offset = 0x4, fixed_abs, tag = 'smem constant byte address 0x4 - core index']
  #allocation1 [shape = 'u32[72,128]{1,0:T(1,128)}', space=vmem, size = 0x9000, scoped, tag = 'internal scratch']
  %s0 = inlined_call_operand.hbm [shape: f32[3,3], index: 0, kind: input, shape index: {}]
  %s1 = inlined_call_operand.hbm [shape: f32[2,3,2,128], index: 1, kind: input, shape index: {}]
  %s2 = inlined_call_operand.hbm [shape: f32[2,3,2,128], index: 2, kind: output, shape index: {}]
  %s3 = sld [smem:[#allocation0]]
  $region49: #{tpu_custom_call.1} parent=0
    _
  %s5 = ssub.s32 1, %s3
  %s6 = scalar_select 0, %s5, %s3
  $region1: #{tpu_custom_call.1} parent=0
    #allocation2 [shape = 'u8[2048]{0}', space=smem, size = 0x800, scoped, tag = 'input window, operand 0, single buffered']
    #allocation3 [shape = 's32[2]{0}', space=sflag, size = 0x8, scoped, tag = 'scoped memory for tpu_custom_call.1']
    #allocation4 [shape = 's32[2]{0}', space=sflag, size = 0x8, scoped, tag = 'scoped memory for tpu_custom_call.1']
    #allocation5 [shape = 's32[2]{0}', space=sflag, size = 0x8, scoped, tag = 'scoped memory for tpu_custom_call.1']
    #allocation6 [shape = 'u8[6144]{0}', space=vmem, size = 0x1800, scoped, tag = 'input window, operand 1']
    #allocation7 [shape = 'u8[6144]{0}', space=vmem, size = 0x1800, scoped, tag = 'output window, operand 0']
    %7 = vsyncpa [#allocation5], 0
    %8 = vsyncpa [#allocation3], 0
    %s9 = scalar_lea.sflag [#allocation3], 1
    %10 = vsyncpa %s9, 0
    %11 = vsyncpa [#allocation4], 0
    %s12 = scalar_lea.sflag [#allocation4], 1
    %13 = vsyncpa %s12, 0
    loop: start=0, step=1, limit=4
    $region2: #{tpu_custom_call.1} parent=1 // loop_pre_header
      _
    $region3: #{tpu_custom_call.1} parent=1 // loop_header
      %s15 = sphi 0, %s19
      %p16 = scmp.ge.s32.totalorder %s15, 4
      %s22 = sphi 0, %s34
      %s23 = sphi 0, %s30
      %s24 = sphi 0, %s22
      %s25 = sphi 0, %s23
      %s26 = sphi 0, %s24
      %s27 = sphi 0, %s25
      %s35 = sphi 0, %s35
      %s37 = sphi 0, %s35
      %s38 = sphi 0, %s37
      %s52 = sphi 0, %s38
      %s60 = sphi 0, %s62
      %s63 = sphi 0, %s60
      %s64 = sphi 0, %s63
      %s80 = sphi 0, %s64
      %s88 = sphi 0, %s90
      %s91 = sphi 0, %s88
      %s92 = sphi 0, %s91
      %s108 = sphi 0, %s92
    $region4: #{tpu_custom_call.1} parent=1 // loop_header_branch
      %18 = sbr.rel (%p16) target = $region8
    $region5: #{tpu_custom_call.1} parent=1 // loop_body
      %s20 = ssub.s32 %s15, 1
      %s21 = ssub.s32 %s15, 2
      %s28 = sadd.s32 1, %s23
      %p29 = scmp.ge.s32.totalorder %s28, 1
      %s30 = scalar_select %p29, 0, %s28
      %s31 = sadd.s32 1, %s22
      %s32 = scalar_select %p29, %s31, %s22
      %p33 = scmp.ge.s32.totalorder %s32, 2
      %s34 = scalar_select %p33, 0, %s32
      %s36 = sadd.s32 %s35, 1
      %p39 = scmp.eq.s32.totalorder %s15, 1
      %p40 = scmp.ne.s32.totalorder %s35, %s37
      %p41 = scmp.eq.s32.totalorder %s15, 0
      %p42 = por %p40, %p41
      %p43 = scmp.ne.s32.totalorder %s35, %s37
      %p44 = scmp.eq.s32.totalorder %s20, 1
      %p45 = por %p43, %p44
      %p46 = scmp.ne.s32.totalorder %s37, %s38
      %p47 = scmp.eq.s32.totalorder %s20, 0
      %p48 = por %p46, %p47
      %p49 = scmp.ne.s32.totalorder %s37, %s38
      %p50 = scmp.eq.s32.totalorder %s21, 1
      %p51 = por %p49, %p50
      %p53 = scmp.ne.s32.totalorder %s38, %s52
      %p54 = scmp.eq.s32.totalorder %s21, 0
      %p55 = por %p53, %p54
      %s56 = ssub.s32 %s22, %s34
      %s57 = ssub.s32 %s23, %s30
      %s58 = sor.u32 %s56, %s57
      %p59 = scmp.eq.s32.totalorder %s58, 0
      %s61 = sadd.s32 %s60, 1
      %s62 = scalar_select %p59, %s60, %s61
      %p65 = pneg %p59
      %p66 = scmp.eq.s32.totalorder %s15, 1
      %p67 = por %p65, %p66
      %p68 = scmp.ne.s32.totalorder %s60, %s63
      %p69 = scmp.eq.s32.totalorder %s15, 0
      %p70 = por %p68, %p69
      %p71 = scmp.ne.s32.totalorder %s60, %s63
      %p72 = scmp.eq.s32.totalorder %s20, 1
      %p73 = por %p71, %p72
      %p74 = scmp.ne.s32.totalorder %s63, %s64
      %p75 = scmp.eq.s32.totalorder %s20, 0
      %p76 = por %p74, %p75
      %p77 = scmp.ne.s32.totalorder %s63, %s64
      %p78 = scmp.eq.s32.totalorder %s21, 1
      %p79 = por %p77, %p78
      %p81 = scmp.ne.s32.totalorder %s64, %s80
      %p82 = scmp.eq.s32.totalorder %s21, 0
      %p83 = por %p81, %p82
      %s84 = ssub.s32 %s22, %s34
      %s85 = ssub.s32 %s23, %s30
      %s86 = sor.u32 %s84, %s85
      %p87 = scmp.eq.s32.totalorder %s86, 0
      %s89 = sadd.s32 %s88, 1
      %s90 = scalar_select %p87, %s88, %s89
      %p93 = pneg %p87
      %p94 = scmp.eq.s32.totalorder %s15, 1
      %p95 = por %p93, %p94
      %p96 = scmp.ne.s32.totalorder %s88, %s91
      %p97 = scmp.eq.s32.totalorder %s15, 0
      %p98 = por %p96, %p97
      %p99 = scmp.ne.s32.totalorder %s88, %s91
      %p100 = scmp.eq.s32.totalorder %s20, 1
      %p101 = por %p99, %p100
      %p102 = scmp.ne.s32.totalorder %s91, %s92
      %p103 = scmp.eq.s32.totalorder %s20, 0
      %p104 = por %p102, %p103
      %p105 = scmp.ne.s32.totalorder %s91, %s92
      %p106 = scmp.eq.s32.totalorder %s21, 1
      %p107 = por %p105, %p106
      %p109 = scmp.ne.s32.totalorder %s92, %s108
      %p110 = scmp.eq.s32.totalorder %s21, 0
      %p111 = por %p109, %p110
      %p112 = scmp.le.s32.totalorder 1, %s15
      %p113 = scmp.lt.s32.totalorder %s15, 3
      %p114 = pnand %p112, %p113
      %p115 = pneg %p114
      // Predicated region
      $region9: #{tpu_custom_call.1} parent=5 // pred_check
        _
      $region10: #{tpu_custom_call.1} parent=5 // pred_check_branch
        %117 = sbr.rel (%p114) target = $region12
      $region11: #{tpu_custom_call.1} parent=5 // pred_region
        %s118 = ssub.s32 %s15, 1
        // Predicated region
        $region13: #{tpu_custom_call.1} parent=11 // pred_check
          %p119 = pneg %p48
        $region14: #{tpu_custom_call.1} parent=11 // pred_check_branch
          %121 = sbr.rel (%p119) target = $region16
        $region15: #{tpu_custom_call.1} parent=11 // pred_region
          %123 = vsyncadd [#allocation5], 0
          %s125 = sshll.u32 %s0, 4
          %s126 = int_to_ptr.hbm [resolvable:$true] %s125
          %128 = dma.hbm_to_smem %s126, 64, [#allocation2], [#allocation5]
        $region16: #{tpu_custom_call.1} parent=11 // pred_fallthru
          _
      $region12: #{tpu_custom_call.1} parent=5 // pred_fallthru
        _
      %p129 = scmp.lt.s32.totalorder %s15, 2
      // Predicated region
      $region17: #{tpu_custom_call.1} parent=5 // pred_check
        %p130 = pneg %p129
      $region18: #{tpu_custom_call.1} parent=5 // pred_check_branch
        %132 = sbr.rel (%p130) target = $region20
      $region19: #{tpu_custom_call.1} parent=5 // pred_region
        // Predicated region
        $region21: #{tpu_custom_call.1} parent=19 // pred_check
          %p133 = pneg %p70
        $region22: #{tpu_custom_call.1} parent=19 // pred_check_branch
          %135 = sbr.rel (%p133) target = $region24
        $region23: #{tpu_custom_call.1} parent=19 // pred_region
          %s136 = sand.u32 %s60, 1
          %s137 = scalar_lea.sflag [#allocation3], %s136
          %s138 = sand.u32 %s60, 1
          %s139 = smul.addr %s138, 6
          %s140 = scalar_lea.vmem [#allocation6], %s139
          %142 = vsyncadd %s137, 0
          %s143 = smul.addr %s22, 3
          %s144 = sadd.s32 %s23, %s143
          %s145 = smul.addr %s144, 2
          %s146 = scalar_lea.hbm %s1, %s145
          %s147 = sshll.u32 %s146, 4
          %s148 = int_to_ptr.hbm [resolvable:$true] %s147
          %s149 = sshll.u32 %s140, 4
          %s150 = int_to_ptr.vmem [resolvable:$true] %s149
          %155 = dma.hbm_to_vmem [thread:$0]  %s148, 96, %s150, %s137, 32, 32, 2
        $region24: #{tpu_custom_call.1} parent=19 // pred_fallthru
          _
      $region20: #{tpu_custom_call.1} parent=5 // pred_fallthru
        _
      %p156 = scmp.le.s32.totalorder 1, %s15
      %p157 = scmp.lt.s32.totalorder %s15, 3
      %p158 = pnand %p156, %p157
      %p159 = pneg %p158
      // Predicated region
      $region25: #{tpu_custom_call.1} parent=5 // pred_check
        _
      $region26: #{tpu_custom_call.1} parent=5 // pred_check_branch
        %161 = sbr.rel (%p158) target = $region28
      $region27: #{tpu_custom_call.1} parent=5 // pred_region
        %s162 = ssub.s32 %s15, 1
        // Predicated region
        $region29: #{tpu_custom_call.1} parent=27 // pred_check
          %p163 = pneg %p48
        $region30: #{tpu_custom_call.1} parent=27 // pred_check_branch
          %165 = sbr.rel (%p163) target = $region32
        $region31: #{tpu_custom_call.1} parent=27 // pred_region
          %167 = dma.done [#allocation5], 64
        $region32: #{tpu_custom_call.1} parent=27 // pred_fallthru
          _
        %s168 = sand.u32 %s63, 1
        %s169 = scalar_lea.sflag [#allocation3], %s168
        %s170 = sand.u32 %s63, 1
        %s171 = smul.addr %s170, 6
        %s172 = scalar_lea.vmem [#allocation6], %s171
        // Predicated region
        $region33: #{tpu_custom_call.1} parent=27 // pred_check
          %p173 = pneg %p76
        $region34: #{tpu_custom_call.1} parent=27 // pred_check_branch
          %175 = sbr.rel (%p173) target = $region36
        $region35: #{tpu_custom_call.1} parent=27 // pred_region
          %177 = dma.done %s169, 96
        $region36: #{tpu_custom_call.1} parent=27 // pred_fallthru
          _
        %178 = sfence
        %p179 = pneg %p48
        %p180 = pneg %p45
        %s181 = sand.u32 %s63, 1
        %s182 = scalar_lea.sflag [#allocation3], %s181
        %s183 = sand.u32 %s63, 1
        %s184 = smul.addr %s183, 6
        %s185 = scalar_lea.vmem [#allocation6], %s184
        %p186 = pneg %p76
        %p187 = pneg %p73
        %p188 = pneg %p104
        %p189 = pneg %p101
        %s190 = sand.u32 %s91, 1
        %s191 = scalar_lea.sflag [#allocation4], %s190
        %s192 = sand.u32 %s91, 1
        %s193 = smul.addr %s192, 6
        %s194 = scalar_lea.vmem [#allocation7], %s193
        %v195 = vld [vmem:[%s172] sm:$0x3]
        %s196 = scalar_lea.vmem %s172, 2 [#allocation6]
        %v197 = vld [vmem:[%s196] sm:$0x3]
        %s198 = scalar_lea.vmem %s172, 4 [#allocation6]
        %v199 = vld [vmem:[%s198] sm:$0x3]
        %s200 = sld [smem:[#allocation2]]
        %v201 = vstv %s200
        %v202 = vmul.f32 %v201, %v195
        %s203 = sld [smem:[#allocation2 + $0x1]]
        %v204 = vstv %s203
        %v205 = vmul.f32 %v204, %v197
        %v206 = vadd.f32 %v202, %v205
        %s207 = sld [smem:[#allocation2 + $0x2]]
        %v208 = vstv %s207
        %v209 = vmul.f32 %v208, %v199
        %v210 = vadd.f32 %v206, %v209
        %211 = vst [vmem:[%s194] sm:$0x3] %v210
        %s212 = sld [smem:[#allocation2 + $0x80]]
        %v213 = vstv %s212
        %v214 = vmul.f32 %v213, %v195
        %s215 = sld [smem:[#allocation2 + $0x81]]
        %v216 = vstv %s215
        %v217 = vmul.f32 %v216, %v197
        %v218 = vadd.f32 %v214, %v217
        %s219 = sld [smem:[#allocation2 + $0x82]]
        %v220 = vstv %s219
        %v221 = vmul.f32 %v220, %v199
        %v222 = vadd.f32 %v218, %v221
        %s223 = scalar_lea.vmem %s194, 2 [#allocation7]
        %224 = vst [vmem:[%s223] sm:$0x3] %v222
        %s225 = sld [smem:[#allocation2 + $0x100]]
        %v226 = vstv %s225
        %v227 = vmul.f32 %v226, %v195
        %s228 = sld [smem:[#allocation2 + $0x101]]
        %v229 = vstv %s228
        %v230 = vmul.f32 %v229, %v197
        %v231 = vadd.f32 %v227, %v230
        %s232 = sld [smem:[#allocation2 + $0x102]]
        %v233 = vstv %s232
        %v234 = vmul.f32 %v233, %v199
        %v235 = vadd.f32 %v231, %v234
        %s236 = scalar_lea.vmem %s194, 4 [#allocation7]
        %237 = vst [vmem:[%s236] sm:$0x3] %v235
        %s238 = sand.u32 %s91, 1
        %s239 = scalar_lea.sflag [#allocation4], %s238
        %s240 = sand.u32 %s91, 1
        %s241 = smul.addr %s240, 6
        %s242 = scalar_lea.vmem [#allocation7], %s241
        // Predicated region
        $region37: #{tpu_custom_call.1} parent=27 // pred_check
          %p243 = pneg %p101
        $region38: #{tpu_custom_call.1} parent=27 // pred_check_branch
          %245 = sbr.rel (%p243) target = $region40
        $region39: #{tpu_custom_call.1} parent=27 // pred_region
          %247 = vsyncadd %s239, 0
          %s248 = smul.addr %s24, 3
          %s249 = sadd.s32 %s25, %s248
          %s250 = smul.addr %s249, 2
          %s251 = scalar_lea.hbm %s2, %s250
          %s252 = sshll.u32 %s242, 4
          %s253 = int_to_ptr.vmem [resolvable:$true] %s252
          %s254 = sshll.u32 %s251, 4
          %s255 = int_to_ptr.hbm [resolvable:$true] %s254
          %260 = dma.vmem_to_hbm [thread:$0]  %s253, 96, %s255, %s239, 32, 32, 2
        $region40: #{tpu_custom_call.1} parent=27 // pred_fallthru
          _
      $region28: #{tpu_custom_call.1} parent=5 // pred_fallthru
        _
      %p261 = scmp.le.s32.totalorder 2, %s15
      // Predicated region
      $region41: #{tpu_custom_call.1} parent=5 // pred_check
        %p262 = pneg %p261
      $region42: #{tpu_custom_call.1} parent=5 // pred_check_branch
        %264 = sbr.rel (%p262) target = $region44
      $region43: #{tpu_custom_call.1} parent=5 // pred_region
        %s265 = ssub.s32 %s15, 2
        // Predicated region
        $region45: #{tpu_custom_call.1} parent=43 // pred_check
          %p266 = pneg %p107
        $region46: #{tpu_custom_call.1} parent=43 // pred_check_branch
          %268 = sbr.rel (%p266) target = $region48
        $region47: #{tpu_custom_call.1} parent=43 // pred_region
          %s269 = sand.u32 %s92, 1
          %s270 = scalar_lea.sflag [#allocation4], %s269
          %s271 = sand.u32 %s92, 1
          %s272 = smul.addr %s271, 6
          %s273 = scalar_lea.vmem [#allocation7], %s272
          %275 = dma.done %s270, 96
        $region48: #{tpu_custom_call.1} parent=43 // pred_fallthru
          _
      $region44: #{tpu_custom_call.1} parent=5 // pred_fallthru
        _
    $region6: #{tpu_custom_call.1} parent=1 // loop_footer
      %s19 = sadd.s32 1, %s15
    $region7: #{tpu_custom_call.1} parent=1 // loop_footer_branch
      %14 = sbr.rel target = $region3
    $region8: #{tpu_custom_call.1} parent=1 // loop_exit
      _
    %276 = vsyncpa [#allocation3], 1
    %s277 = scalar_lea.sflag [#allocation3], 1
    %278 = vsyncpa %s277, 1
    %279 = vsyncpa [#allocation4], 1
    %s280 = scalar_lea.sflag [#allocation4], 1
    %281 = vsyncpa %s280, 1
    %282 = vsyncpa [#allocation5], 1
    %s283 = scalar_lea.sflag [#allocation5], 1
    %284 = vsyncpa %s283, 1

</llo_original>
